<compile_context>
chip_gen: v7x
topology: tpu7x:2x2x1
jax: 0.10.0
libtpu: 0.0.40
codegen_flags: <defaults>
</compile_context>

<pallas_src>
import functools

import jax
import jax.numpy as jnp
from jax.experimental import pallas as pl
from jax.experimental.pallas import tpu as pltpu

LANE = 128


def _round_up(x, m):
    return (x + m - 1) // m * m


# --------------------------------------------------------------------------- #
# Kernels
# --------------------------------------------------------------------------- #
def mlp_fused_kernel(x_ref, w1_ref, b1_ref, w2_ref, b2_ref, o_ref):
    """Whole hidden dim resident: one batch tile per grid step."""
    h = jnp.dot(x_ref[...], w1_ref[...], preferred_element_type=jnp.float32)
    h = jnp.maximum(h + b1_ref[...], 0.0)                 # bias + ReLU in f32
    out = jnp.dot(h.astype(w2_ref.dtype), w2_ref[...],
                  preferred_element_type=jnp.float32)
    o_ref[...] = (out + b2_ref[...]).astype(o_ref.dtype)  # lane-dense, unmasked store


def mlp_ktiled_kernel(x_ref, w1_ref, b1_ref, w2_ref, b2_ref, o_ref, acc_ref):
    """Hidden dim tiled over grid axis 1 ('arbitrary'): accumulate in f32 VMEM."""
    k = pl.program_id(1)

    @pl.when(k == 0)
    def _():
        acc_ref[...] = jnp.zeros_like(acc_ref)

    h = jnp.dot(x_ref[...], w1_ref[...], preferred_element_type=jnp.float32)
    h = jnp.maximum(h + b1_ref[...], 0.0)
    acc_ref[...] += jnp.dot(h.astype(w2_ref.dtype), w2_ref[...],
                            preferred_element_type=jnp.float32)

    @pl.when(k == pl.num_programs(1) - 1)
    def _():
        o_ref[...] = (acc_ref[...] + b2_ref[...]).astype(o_ref.dtype)


# --------------------------------------------------------------------------- #
# One-time capability / hardware probes
# --------------------------------------------------------------------------- #
@functools.lru_cache(maxsize=1)
def _single_buffer_supported():
    """Does this jax build accept pl.Buffered(1) on an input BlockSpec?
    Probed once by compiling a trivial kernel, so the answer covers both
    BlockSpec construction and Mosaic lowering (robust under jax.jit, unlike a
    runtime try/except around the real call)."""
    if not hasattr(pl, "Buffered"):
        return False
    try:
        spec = pl.BlockSpec((8, 128), lambda i: (0, 0),
                            pipeline_mode=pl.Buffered(1))

        def _copy(x_ref, o_ref):
            o_ref[...] = x_ref[...]

        fn = pl.pallas_call(
            _copy,
            out_shape=jax.ShapeDtypeStruct((8, 128), jnp.float32),
            grid=(1,),
            in_specs=[spec],
            out_specs=pl.BlockSpec((8, 128), lambda i: (0, 0)),
        )
        jax.jit(fn).lower(jnp.zeros((8, 128), jnp.float32)).compile()
        return True
    except Exception:
        return False


@functools.lru_cache(maxsize=1)
def _vmem_capacity_bytes():
    try:
        return int(pltpu.get_tpu_info().vmem_capacity_bytes)
    except Exception:
        return 64 << 20  # conservative: v7x per-TensorCore VMEM


# --------------------------------------------------------------------------- #
# Parameter prep (hoisted out of the per-call path)
# --------------------------------------------------------------------------- #
def prepare_params(w1, b1, w2, b2, *, compute_dtype=jnp.bfloat16):
    """One-time parameter prep:
       * hidden / class dims zero-padded to multiples of 128 (lane-dense
         matmuls and unmasked output stores),
       * weights cast to the MXU compute dtype (bf16 halves HBM traffic;
         in-kernel accumulation stays f32),
       * biases reshaped to (1, n) and kept f32 (added on the f32 accumulator).
       Layout: w1 [input_dim, hidden], w2 [hidden, num_classes]."""
    input_dim, hidden_dim = w1.shape
    num_classes = w2.shape[1]
    hidden_pad = _round_up(hidden_dim, LANE)
    n_pad = _round_up(num_classes, LANE)
    w1p = jnp.pad(w1, ((0, 0), (0, hidden_pad - hidden_dim))).astype(compute_dtype)
    b1p = (jnp.pad(b1, (0, hidden_pad - hidden_dim))
           .reshape(1, hidden_pad).astype(jnp.float32))
    w2p = jnp.pad(w2, ((0, hidden_pad - hidden_dim),
                       (0, n_pad - num_classes))).astype(compute_dtype)
    b2p = (jnp.pad(b2, (0, n_pad - num_classes))
           .reshape(1, n_pad).astype(jnp.float32))
    return {"w1": w1p, "b1": b1p, "w2": w2p, "b2": b2p,
            "num_classes": int(num_classes)}


# --------------------------------------------------------------------------- #
# Tiling heuristics
# --------------------------------------------------------------------------- #
def _pick_batch_tile(B, input_dim, n_pad, sub, itemsize):
    # x + out tiles, double-buffered, kept under ~8 MiB of VMEM.
    row_bytes = 2 * (input_dim + n_pad) * itemsize
    cap = max(sub, min(2048, ((8 << 20) // max(row_bytes, 1)) // sub * sub))
    b_pad = _round_up(B, sub)
    if b_pad <= cap:
        return b_pad                       # one grid step for small batches
    # Split into an EVEN number of steps so v7x's two TensorCores stay balanced.
    steps = 2
    while _round_up(pl.cdiv(B, steps), sub) > cap:
        steps += 2
    return _round_up(pl.cdiv(B, steps), sub)


def _pick_hidden_tile(hidden_pad, desired):
    """Largest multiple of 128 that divides hidden_pad and is <= desired."""
    desired = max(LANE, min(hidden_pad, (desired // LANE) * LANE))
    best = LANE
    t = LANE
    while t <= desired:
        if hidden_pad % t == 0:
            best = t
        t += LANE
    return best


# --------------------------------------------------------------------------- #
# Jitted implementation (all tile config is static)
# --------------------------------------------------------------------------- #
@functools.partial(
    jax.jit,
    static_argnames=("tb", "tk", "num_classes", "single_buffer", "vmem_limit"))
def _forward_impl(x, w1, b1, w2, b2, *, tb, tk, num_classes, single_buffer,
                  vmem_limit):
    B, input_dim = x.shape
    hidden_pad = w1.shape[1]
    n_pad = w2.shape[1]
    cdtype = w1.dtype
    isz = jnp.dtype(cdtype).itemsize

    xc = x.astype(cdtype)
    B_pad = _round_up(B, tb)
    if B_pad != B:
        xc = jnp.pad(xc, ((0, B_pad - B), (0, 0)))   # ragged batch: pad, slice later

    # Single-buffer the constant-index resident weights when supported
    # (halves their VMEM footprint at zero perf cost — matters most on v7x).
    w_kwargs = {"pipeline_mode": pl.Buffered(1)} if single_buffer else {}

    if tk is None:
        # Resident-weights path (toy / moderate hidden_dim).
        grid = (B_pad // tb,)
        in_specs = [
            pl.BlockSpec((tb, input_dim), lambda i: (i, 0)),                    # x tile
            pl.BlockSpec((input_dim, hidden_pad), lambda i: (0, 0), **w_kwargs),  # W1
            pl.BlockSpec((1, hidden_pad), lambda i: (0, 0), **w_kwargs),        # b1
            pl.BlockSpec((hidden_pad, n_pad), lambda i: (0, 0), **w_kwargs),    # W2
            pl.BlockSpec((1, n_pad), lambda i: (0, 0), **w_kwargs),             # b2
        ]
        out_specs = pl.BlockSpec((tb, n_pad), lambda i: (i, 0))
        scratch_shapes = []
        dims = ("parallel",)
        kernel = mlp_fused_kernel
    else:
        # Hidden-dim tiled path: weight chunks streamed, f32 accumulator.
        grid = (B_pad // tb, hidden_pad // tk)
        in_specs = [
            pl.BlockSpec((tb, input_dim), lambda i, k: (i, 0)),   # constant over k -> no re-DMA
            pl.BlockSpec((input_dim, tk), lambda i, k: (0, k)),   # W1 column chunk
            pl.BlockSpec((1, tk), lambda i, k: (0, k)),           # b1 chunk
            pl.BlockSpec((tk, n_pad), lambda i, k: (k, 0)),       # W2 row chunk
            pl.BlockSpec((1, n_pad), lambda i, k: (0, 0)),        # b2
        ]
        out_specs = pl.BlockSpec((tb, n_pad), lambda i, k: (i, 0))
        scratch_shapes = [pltpu.VMEM((tb, n_pad), jnp.float32)]
        dims = ("parallel", "arbitrary")
        kernel = mlp_ktiled_kernel

    flops = 2 * B_pad * (input_dim * hidden_pad + hidden_pad * n_pad)
    bytes_accessed = (B_pad * (input_dim + n_pad) * isz
                      + (w1.size + w2.size) * isz
                      + (b1.size + b2.size) * 4)

    out = pl.pallas_call(
        kernel,
        out_shape=jax.ShapeDtypeStruct((B_pad, n_pad), cdtype),   # bf16 writeback
        grid_spec=pltpu.PrefetchScalarGridSpec(
            num_scalar_prefetch=0,
            grid=grid,
            in_specs=in_specs,
            out_specs=out_specs,
            scratch_shapes=scratch_shapes,
        ),
        compiler_params=pltpu.CompilerParams(
            dimension_semantics=dims,
            vmem_limit_bytes=vmem_limit,
        ),
        cost_estimate=pl.CostEstimate(
            flops=flops, transcendentals=0, bytes_accessed=bytes_accessed),
    )(xc, w1, b1, w2, b2)

    return out[:B, :num_classes].astype(x.dtype)


# --------------------------------------------------------------------------- #
# Public forward
# --------------------------------------------------------------------------- #
def toy_classifier_forward(x, params, *, batch_tile=None, hidden_tile=None):
    """x: [B, input_dim] (any float dtype); params from prepare_params()."""
    B, input_dim = x.shape
    w1, b1, w2, b2 = params["w1"], params["b1"], params["w2"], params["b2"]
    num_classes = params["num_classes"]
    hidden_pad = w1.shape[1]
    n_pad = w2.shape[1]
    isz = jnp.dtype(w1.dtype).itemsize
    sub = {4: 8, 2: 16, 1: 32}.get(isz, 8)    # sublane tile per packed dtype

    if batch_tile is not None:
        tb = _round_up(max(int(batch_tile), sub), sub)
    else:
        tb = _pick_batch_tile(B, input_dim, n_pad, sub, isz)

    single_buffer = _single_buffer_supported()
    vmem_cap = _vmem_capacity_bytes()
    budget = int(0.7 * vmem_cap)

    io_bytes = 2 * tb * (input_dim + n_pad) * isz            # x/out double-buffered
    w_copies = 1 if single_buffer else 2
    resident_bytes = (w_copies * (input_dim * hidden_pad + hidden_pad * n_pad) * isz
                      + w_copies * (hidden_pad + n_pad) * 4)

    if hidden_tile is not None:
        tk = _pick_hidden_tile(hidden_pad, int(hidden_tile))
        if tk >= hidden_pad:
            tk = None
    elif io_bytes + resident_bytes <= budget:
        tk = None                                            # weights stay resident
    else:
        # v7x (64 MiB VMEM) fallback: largest 128-multiple hidden chunk whose
        # double-buffered weight slices + f32 accumulator still fit the budget.
        tk = LANE
        t = LANE
        while t < hidden_pad:
            need_t = (io_bytes + tb * n_pad * 4
                      + 2 * (input_dim * t + t * n_pad) * isz
                      + 2 * (t + n_pad) * 4)
            if hidden_pad % t == 0 and need_t <= budget:
                tk = t
            t += LANE

    if tk is None:
        need = io_bytes + resident_bytes
    else:
        need = (io_bytes + tb * n_pad * 4
                + 2 * (input_dim * tk + tk * n_pad) * isz
                + 2 * (tk + n_pad) * 4)
    vmem_limit = int(min(vmem_cap, max(need + (4 << 20), 16 << 20)))

    return _forward_impl(x, w1, b1, w2, b2, tb=tb, tk=tk,
                         num_classes=num_classes,
                         single_buffer=single_buffer, vmem_limit=vmem_limit)


def init_params(key, input_dim, hidden_dim, num_classes, dtype=jnp.float32):
    """Deterministic init mimicking nn.Linear default (U[-1/sqrt(fan_in), ...])."""
    k1, k2, k3, k4 = jax.random.split(key, 4)
    bound1 = 1.0 / jnp.sqrt(input_dim)
    bound2 = 1.0 / jnp.sqrt(hidden_dim)
    w1 = jax.random.uniform(k1, (input_dim, hidden_dim), dtype, -bound1, bound1)
    b1 = jax.random.uniform(k2, (hidden_dim,), dtype, -bound1, bound1)
    w2 = jax.random.uniform(k3, (hidden_dim, num_classes), dtype, -bound2, bound2)
    b2 = jax.random.uniform(k4, (num_classes,), dtype, -bound2, bound2)
    return w1, b1, w2, b2


def _f32_reference(x, w1, b1, w2, b2):
    return jnp.maximum(x @ w1 + b1, 0.0) @ w2 + b2


def _bf16_reference(x, w1, b1, w2, b2):
    cd = jnp.bfloat16
    h = jnp.dot(x.astype(cd), w1.astype(cd),
                preferred_element_type=jnp.float32) + b1
    h = jnp.maximum(h, 0.0)
    return jnp.dot(h.astype(cd), w2.astype(cd),
                   preferred_element_type=jnp.float32) + b2


if __name__ == "__main__":
    # Small, module-consistent shapes; ragged batch (70) and non-lane-aligned
    # num_classes (10) exercise the padding paths.
    batch, input_dim, hidden_dim, num_classes = 70, 32, 64, 10

    key = jax.random.PRNGKey(0)
    kx, kp = jax.random.split(key)
    x = jax.random.normal(kx, (batch, input_dim), jnp.float32)
    w1, b1, w2, b2 = init_params(kp, input_dim, hidden_dim, num_classes)
    params = prepare_params(w1, b1, w2, b2)

    out = jax.block_until_ready(toy_classifier_forward(x, params))
    assert out.shape == (batch, num_classes), out.shape
    assert out.dtype == x.dtype, out.dtype
    out32 = out.astype(jnp.float32)
    ref_bf = _bf16_reference(x, w1, b1, w2, b2)
    ref_f32 = _f32_reference(x, w1, b1, w2, b2)
    assert jnp.allclose(out32, ref_bf, atol=2e-2, rtol=2e-2), \
        float(jnp.max(jnp.abs(out32 - ref_bf)))
    assert jnp.allclose(out32, ref_f32, atol=1e-1, rtol=1e-1), \
        float(jnp.max(jnp.abs(out32 - ref_f32)))

    # Exercise the hidden-dim (K) tiled path used when resident weights would
    # not fit VMEM (e.g. large hidden_dim on v7x's 64 MiB per-core VMEM).
    hidden_big = 256
    w1b, b1b, w2b, b2b = init_params(kp, input_dim, hidden_big, num_classes)
    params_b = prepare_params(w1b, b1b, w2b, b2b)
    out_b = jax.block_until_ready(
        toy_classifier_forward(x, params_b, hidden_tile=128))
    out_b32 = out_b.astype(jnp.float32)
    ref_b_bf = _bf16_reference(x, w1b, b1b, w2b, b2b)
    ref_b_f32 = _f32_reference(x, w1b, b1b, w2b, b2b)
    assert out_b.shape == (batch, num_classes)
    assert jnp.allclose(out_b32, ref_b_bf, atol=2e-2, rtol=2e-2), \
        float(jnp.max(jnp.abs(out_b32 - ref_b_bf)))
    assert jnp.allclose(out_b32, ref_b_f32, atol=1e-1, rtol=1e-1), \
        float(jnp.max(jnp.abs(out_b32 - ref_b_f32)))

    print("KERNEL_OK")
</pallas_src>

<mosaic_0001>
module attributes {stable_mosaic.version = 11 : i64} {
  func.func @mlp_fused_kernel(%arg0: i32, %arg1: memref<80x32xbf16, #tpu.memory_space<vmem>>, %arg2: memref<32x128xbf16, #tpu.memory_space<vmem>>, %arg3: memref<1x128xf32, #tpu.memory_space<vmem>>, %arg4: memref<128x128xbf16, #tpu.memory_space<vmem>>, %arg5: memref<1x128xf32, #tpu.memory_space<vmem>>, %arg6: memref<80x128xbf16, #tpu.memory_space<vmem>>) attributes {dimension_semantics = [#tpu.dimension_semantics<parallel>], iteration_bounds = array<i64: 1>, scalar_prefetch = 0 : i64, scratch_operands = 0 : i64, tpu.core_type = #tpu.core_type<tc>, window_params = [{transform_indices = @transform_0, window_bounds = array<i64: 80, 32>}, {pipeline_mode = #tpu.pipeline_mode<synchronous>, transform_indices = @transform_1, window_bounds = array<i64: 32, 128>}, {pipeline_mode = #tpu.pipeline_mode<synchronous>, transform_indices = @transform_2, window_bounds = array<i64: 1, 128>}, {pipeline_mode = #tpu.pipeline_mode<synchronous>, transform_indices = @transform_3, window_bounds = array<i64: 128, 128>}, {pipeline_mode = #tpu.pipeline_mode<synchronous>, transform_indices = @transform_4, window_bounds = array<i64: 1, 128>}, {transform_indices = @transform_5, window_bounds = array<i64: 80, 128>}]} {
    %c0 = arith.constant 0 : index
    %c0_0 = arith.constant 0 : index
    %0 = vector.load %arg1[%c0, %c0_0] : memref<80x32xbf16, #tpu.memory_space<vmem>>, vector<80x32xbf16>
    %c0_1 = arith.constant 0 : index
    %c0_2 = arith.constant 0 : index
    %1 = vector.load %arg2[%c0_1, %c0_2] : memref<32x128xbf16, #tpu.memory_space<vmem>>, vector<32x128xbf16>
    %cst = arith.constant dense<0.000000e+00> : vector<80x128xf32>
    %2 = tpu.matmul %0, %1, %cst {dimension_numbers = #tpu.dot_dimension_numbers<[1], [0], [0], [1], [0, 0, 1, 1], [], []>} : vector<80x32xbf16>, vector<32x128xbf16>, vector<80x128xf32> -> vector<80x128xf32>
    %c0_3 = arith.constant 0 : index
    %c0_4 = arith.constant 0 : index
    %3 = vector.load %arg3[%c0_3, %c0_4] : memref<1x128xf32, #tpu.memory_space<vmem>>, vector<1x128xf32>
    %4 = vector.broadcast %3 : vector<1x128xf32> to vector<80x128xf32>
    %5 = arith.addf %2, %4 : vector<80x128xf32>
    %cst_5 = arith.constant 0.000000e+00 : f32
    %6 = vector.broadcast %cst_5 : f32 to vector<80x128xf32>
    %7 = arith.maximumf %5, %6 : vector<80x128xf32>
    %8 = arith.truncf %7 : vector<80x128xf32> to vector<80x128xbf16>
    %c0_6 = arith.constant 0 : index
    %c0_7 = arith.constant 0 : index
    %9 = vector.load %arg4[%c0_6, %c0_7] : memref<128x128xbf16, #tpu.memory_space<vmem>>, vector<128x128xbf16>
    %cst_8 = arith.constant dense<0.000000e+00> : vector<80x128xf32>
    %10 = tpu.matmul %8, %9, %cst_8 {dimension_numbers = #tpu.dot_dimension_numbers<[1], [0], [0], [1], [0, 0, 1, 1], [], []>} : vector<80x128xbf16>, vector<128x128xbf16>, vector<80x128xf32> -> vector<80x128xf32>
    %c0_9 = arith.constant 0 : index
    %c0_10 = arith.constant 0 : index
    %11 = vector.load %arg5[%c0_9, %c0_10] : memref<1x128xf32, #tpu.memory_space<vmem>>, vector<1x128xf32>
    %12 = vector.broadcast %11 : vector<1x128xf32> to vector<80x128xf32>
    %13 = arith.addf %10, %12 : vector<80x128xf32>
    %14 = arith.truncf %13 : vector<80x128xf32> to vector<80x128xbf16>
    %c0_11 = arith.constant 0 : index
    %c0_12 = arith.constant 0 : index
    %15 = vector.load %arg6[%c0_11, %c0_12] : memref<80x128xbf16, #tpu.memory_space<vmem>>, vector<80x128xbf16>
    tpu.vector_store %arg6[%c0_11, %c0_12], %14 {strides = array<i32>} : memref<80x128xbf16, #tpu.memory_space<vmem>>, vector<80x128xbf16>,
    return
  }
  func.func @transform_0(%arg0: i32) -> (i32, i32) {
    %c0_i32 = arith.constant 0 : i32
    %c0_i32_0 = arith.constant 0 : i32
    return %arg0, %c0_i32 : i32, i32
  }
  func.func @transform_1(%arg0: i32) -> (i32, i32) {
    %c0_i32 = arith.constant 0 : i32
    %c0_i32_0 = arith.constant 0 : i32
    %c0_i32_1 = arith.constant 0 : i32
    return %c0_i32, %c0_i32_0 : i32, i32
  }
  func.func @transform_2(%arg0: i32) -> (i32, i32) {
    %c0_i32 = arith.constant 0 : i32
    %c0_i32_0 = arith.constant 0 : i32
    %c0_i32_1 = arith.constant 0 : i32
    return %c0_i32, %c0_i32_0 : i32, i32
  }
  func.func @transform_3(%arg0: i32) -> (i32, i32) {
    %c0_i32 = arith.constant 0 : i32
    %c0_i32_0 = arith.constant 0 : i32
    %c0_i32_1 = arith.constant 0 : i32
    return %c0_i32, %c0_i32_0 : i32, i32
  }
  func.func @transform_4(%arg0: i32) -> (i32, i32) {
    %c0_i32 = arith.constant 0 : i32
    %c0_i32_0 = arith.constant 0 : i32
    %c0_i32_1 = arith.constant 0 : i32
    return %c0_i32, %c0_i32_0 : i32, i32
  }
  func.func @transform_5(%arg0: i32) -> (i32, i32) {
    %c0_i32 = arith.constant 0 : i32
    %c0_i32_0 = arith.constant 0 : i32
    return %arg0, %c0_i32 : i32, i32
  }
}

</mosaic_0001>

<llo_original>
// kernel: _forward_impl.1
$region0: #{_forward_impl.1}
  #allocation0 [shape = 'u32[]', space=smem, size = 0x4, offset = 0x4, fixed_abs, tag = 'smem constant byte address 0x4 - core index']
  #allocation1 [shape = 'u32[144,128]{1,0:T(1,128)}', space=vmem, size = 0x12000, scoped, tag = 'internal scratch']
  %s0 = inlined_call_operand.vmem [shape: bf16[80,32], index: 0, kind: input, shape index: {}]
  %s1 = inlined_call_operand.vmem [shape: bf16[32,128], index: 1, kind: input, shape index: {}]
  %s2 = inlined_call_operand.vmem [shape: f32[1,128], index: 2, kind: input, shape index: {}]
  %s3 = inlined_call_operand.vmem [shape: bf16[128,128], index: 3, kind: input, shape index: {}]
  %s4 = inlined_call_operand.vmem [shape: f32[1,128], index: 4, kind: input, shape index: {}]
  %s5 = inlined_call_operand.vmem [shape: bf16[80,128], index: 5, kind: output, shape index: {}]
  %s6 = sld [smem:[#allocation0]]
  $region30: #{_forward_impl.1} parent=0
    _
  %s8 = ssub.s32 1, %s6
  %s9 = scalar_select 0, %s8, %s6
  // Predicated region
  $region2: #{_forward_impl.1} parent=0 // pred_check
    _
  $region3: #{_forward_impl.1} parent=0 // pred_check_branch
    %11 = sbr.rel (0) target = $region5
  $region4: #{_forward_impl.1} parent=0 // pred_region
    _
  $region5: #{_forward_impl.1} parent=0 // pred_fallthru
    _
  // Predicated region
  $region6: #{_forward_impl.1} parent=0 // pred_check
    _
  $region7: #{_forward_impl.1} parent=0 // pred_check_branch
    %13 = sbr.rel (0) target = $region9
  $region8: #{_forward_impl.1} parent=0 // pred_region
    _
  $region9: #{_forward_impl.1} parent=0 // pred_fallthru
    _
  // Predicated region
  $region10: #{_forward_impl.1} parent=0 // pred_check
    _
  $region11: #{_forward_impl.1} parent=0 // pred_check_branch
    %15 = sbr.rel (0) target = $region13
  $region12: #{_forward_impl.1} parent=0 // pred_region
    _
  $region13: #{_forward_impl.1} parent=0 // pred_fallthru
    _
  // Predicated region
  $region14: #{_forward_impl.1} parent=0 // pred_check
    _
  $region15: #{_forward_impl.1} parent=0 // pred_check_branch
    %17 = sbr.rel (0) target = $region17
  $region16: #{_forward_impl.1} parent=0 // pred_region
    _
  $region17: #{_forward_impl.1} parent=0 // pred_fallthru
    _
  // Predicated region
  $region18: #{_forward_impl.1} parent=0 // pred_check
    _
  $region19: #{_forward_impl.1} parent=0 // pred_check_branch
    %19 = sbr.rel (0) target = $region21
  $region20: #{_forward_impl.1} parent=0 // pred_region
    _
  $region21: #{_forward_impl.1} parent=0 // pred_fallthru
    _
  %v21 = vld [vmem:[%s0] sm:$0xf]
  %v22 = vld [vmem:[%s0 + $0x4] sm:$0xf]
  %v23 = vld [vmem:[%s0 + $0x8] sm:$0xf]
  %v24 = vld [vmem:[%s0 + $0xc] sm:$0xf]
  %v25 = vld [vmem:[%s0 + $0x10] sm:$0xf]
  %v26 = vld [vmem:[%s0 + $0x14] sm:$0xf]
  %v27 = vld [vmem:[%s0 + $0x18] sm:$0xf]
  %v28 = vld [vmem:[%s0 + $0x1c] sm:$0xf]
  %v29 = vld [vmem:[%s0 + $0x20] sm:$0xf]
  %v30 = vld [vmem:[%s0 + $0x24] sm:$0xf]
  %v31 = vld [vmem:[%s1] sm:$0xf]
  %v32 = vld [vmem:[%s1 + $0x4] sm:$0xf]
  %v33 = vld [vmem:[%s1 + $0x8] sm:$0xf]
  %v34 = vld [vmem:[%s1 + $0xc] sm:$0xf]
  %v35 = vld [vmem:[%s2] sm:$0x1]
  %v37 = vlaneseq
  %v38 = vshrl.u32 %v37, 7
  %v39 = vsub.s32 0, %v38
  %v40 = vrot.slane %v35, %v39
  %v52 = vunpack.c.l.b16 %v21
  %v53 = vunpack.c.l.b16 %v22
  %v54 = vunpack.c.l.b16 %v23
  %v55 = vunpack.c.l.b16 %v24
  %v56 = vunpack.c.l.b16 %v25
  %v57 = vunpack.c.l.b16 %v26
  %v58 = vunpack.c.l.b16 %v27
  %v59 = vunpack.c.l.b16 %v28
  %v60 = vunpack.c.l.b16 %v29
  %v61 = vunpack.c.l.b16 %v30
  %v62 = vpack.c.b16 %v53, %v52
  %v63 = vpack.c.b16 %v55, %v54
  %v64 = vpack.c.b16 %v57, %v56
  %v65 = vpack.c.b16 %v59, %v58
  %v66 = vpack.c.b16 %v61, %v60
  %v71 = vunpack.c.l.b16 %v31
  %v72 = vunpack.c.l.b16 %v32
  %v73 = vunpack.c.l.b16 %v33
  %v74 = vunpack.c.l.b16 %v34
  %v75 = vpack.c.b16 %v72, %v71
  %v76 = vpack.c.b16 %v74, %v73
  %vm79 = vcmask 261120
  %v81 = vsel %vm79, %v62, 0
  %v84 = vsel %vm79, %v63, 0
  %v87 = vsel %vm79, %v64, 0
  %v90 = vsel %vm79, %v65, 0
  %v93 = vsel %vm79, %v66, 0
  %95 = vmatprep.subr.bf16.mxu0 0
  %96 = vmatpush1.bf16.msra.mxu0 %v75
  %97 = vmatprep.subr.bf16.mxu0 0
  %98 = vmatpush1.bf16.msra.mxu0 %v76
  %99 = vmatprep.subr.bf16.mxu0 0
  %100 = vmatpush1.bf16.msra.mxu0 0
  %101 = vmatprep.subr.bf16.mxu0 0
  %102 = vmatpush1.bf16.msra.mxu0 0
  %103 = vmatprep.subr.bf16.mxu0 0
  %104 = vmatpush1.bf16.msra.mxu0 0
  %105 = vmatprep.subr.bf16.mxu0 0
  %106 = vmatpush1.bf16.msra.mxu0 0
  %107 = vmatprep.subr.bf16.mxu0 0
  %108 = vmatpush1.bf16.msra.mxu0 0
  %109 = vmatprep.subr.bf16.mxu0 0
  %110 = vmatpush1.bf16.msra.mxu0 0
  %111 = vmatprep.subr.bf16.mxu0 0
  %112 = vmatpush1.bf16.msra.mxu0 0
  %113 = vmatprep.subr.bf16.mxu0 0
  %114 = vmatpush1.bf16.msra.mxu0 0
  %115 = vmatprep.subr.bf16.mxu0 0
  %116 = vmatpush1.bf16.msra.mxu0 0
  %117 = vmatprep.subr.bf16.mxu0 0
  %118 = vmatpush1.bf16.msra.mxu0 0
  %119 = vmatprep.subr.bf16.mxu0 0
  %120 = vmatpush1.bf16.msra.mxu0 0
  %121 = vmatprep.subr.bf16.mxu0 0
  %122 = vmatpush1.bf16.msra.mxu0 0
  %123 = vmatprep.subr.bf16.mxu0 0
  %124 = vmatpush1.bf16.msra.mxu0 0
  %125 = vmatprep.subr.bf16.mxu0 0
  %126 = vmatpush1.bf16.msra.mxu0 0
  %127 = vmatprep.mubr.bf16.mxu0 0
  %128 = vmatmul.mubr.bf16.gmra.mrb[0].mxu0 %v81
  %v129 = vpop.f32.mrb[0].mxu0
  %v130 = vadd.f32 %v40, %v129
  %v131 = vpop.f32.mrb[0].mxu0
  %v132 = vpop.f32.mrb[0].mxu0
  %v133 = vadd.f32 %v40, %v132
  %v134 = vpop.f32.mrb[0].mxu0
  %135 = vmatprep.mubr.bf16.mxu0 0
  %136 = vmatmul.mubr.bf16.gmra.mrb[0].mxu0 %v84
  %v137 = vpop.f32.mrb[0].mxu0
  %v138 = vadd.f32 %v40, %v137
  %v139 = vpop.f32.mrb[0].mxu0
  %v140 = vpop.f32.mrb[0].mxu0
  %v141 = vadd.f32 %v40, %v140
  %v142 = vpop.f32.mrb[0].mxu0
  %143 = vmatprep.mubr.bf16.mxu0 0
  %144 = vmatmul.mubr.bf16.gmra.mrb[0].mxu0 %v87
  %v145 = vpop.f32.mrb[0].mxu0
  %v146 = vadd.f32 %v40, %v145
  %v147 = vpop.f32.mrb[0].mxu0
  %v148 = vpop.f32.mrb[0].mxu0
  %v149 = vadd.f32 %v40, %v148
  %v150 = vpop.f32.mrb[0].mxu0
  %151 = vmatprep.mubr.bf16.mxu0 0
  %152 = vmatmul.mubr.bf16.gmra.mrb[0].mxu0 %v90
  %v153 = vpop.f32.mrb[0].mxu0
  %v154 = vadd.f32 %v40, %v153
  %v155 = vpop.f32.mrb[0].mxu0
  %v156 = vpop.f32.mrb[0].mxu0
  %v157 = vadd.f32 %v40, %v156
  %v158 = vpop.f32.mrb[0].mxu0
  %159 = vmatprep.mubr.bf16.mxu0 0
  %160 = vmatmul.mubr.bf16.gmra.mrb[0].mxu0 %v93
  %v161 = vpop.f32.mrb[0].mxu0
  %v162 = vadd.f32 %v40, %v161
  %v163 = vpop.f32.mrb[0].mxu0
  %v164 = vpop.f32.mrb[0].mxu0
  %v165 = vadd.f32 %v40, %v164
  %v166 = vpop.f32.mrb[0].mxu0
  %167 = vdwg.mxu0
  %v168 = vmax.f32 %v130, 0.0
  %v169 = vmax.f32 %v133, 0.0
  %v170 = vmax.f32 %v138, 0.0
  %v171 = vmax.f32 %v141, 0.0
  %v172 = vmax.f32 %v146, 0.0
  %v173 = vmax.f32 %v149, 0.0
  %v174 = vmax.f32 %v154, 0.0
  %v175 = vmax.f32 %v157, 0.0
  %v176 = vmax.f32 %v162, 0.0
  %v177 = vmax.f32 %v165, 0.0
  %v178 = vpack.c.bf16 %v169, %v168
  %v179 = vpack.c.bf16 %v171, %v170
  %v180 = vpack.c.bf16 %v173, %v172
  %v181 = vpack.c.bf16 %v175, %v174
  %v182 = vpack.c.bf16 %v177, %v176
  %v183 = vld [vmem:[%s3] sm:$0xf]
  %v184 = vld [vmem:[%s3 + $0x4] sm:$0xf]
  %v185 = vld [vmem:[%s3 + $0x8] sm:$0xf]
  %v186 = vld [vmem:[%s3 + $0xc] sm:$0xf]
  %v187 = vld [vmem:[%s3 + $0x10] sm:$0xf]
  %v188 = vld [vmem:[%s3 + $0x14] sm:$0xf]
  %v189 = vld [vmem:[%s3 + $0x18] sm:$0xf]
  %v190 = vld [vmem:[%s3 + $0x1c] sm:$0xf]
  %v191 = vld [vmem:[%s3 + $0x20] sm:$0xf]
  %v192 = vld [vmem:[%s3 + $0x24] sm:$0xf]
  %v193 = vld [vmem:[%s3 + $0x28] sm:$0xf]
  %v194 = vld [vmem:[%s3 + $0x2c] sm:$0xf]
  %v195 = vld [vmem:[%s3 + $0x30] sm:$0xf]
  %v196 = vld [vmem:[%s3 + $0x34] sm:$0xf]
  %v197 = vld [vmem:[%s3 + $0x38] sm:$0xf]
  %v198 = vld [vmem:[%s3 + $0x3c] sm:$0xf]
  %v199 = vld [vmem:[%s4] sm:$0x1]
  %v201 = vlaneseq
  %v202 = vshrl.u32 %v201, 7
  %v203 = vsub.s32 0, %v202
  %v204 = vrot.slane %v199, %v203
  %v222 = vunpack.c.l.b16 %v183
  %v223 = vunpack.c.l.b16 %v184
  %v224 = vunpack.c.l.b16 %v185
  %v225 = vunpack.c.l.b16 %v186
  %v226 = vunpack.c.l.b16 %v187
  %v227 = vunpack.c.l.b16 %v188
  %v228 = vunpack.c.l.b16 %v189
  %v229 = vunpack.c.l.b16 %v190
  %v230 = vunpack.c.l.b16 %v191
  %v231 = vunpack.c.l.b16 %v192
  %v232 = vunpack.c.l.b16 %v193
  %v233 = vunpack.c.l.b16 %v194
  %v234 = vunpack.c.l.b16 %v195
  %v235 = vunpack.c.l.b16 %v196
  %v236 = vunpack.c.l.b16 %v197
  %v237 = vunpack.c.l.b16 %v198
  %v238 = vpack.c.b16 %v223, %v222
  %v239 = vpack.c.b16 %v225, %v224
  %v240 = vpack.c.b16 %v227, %v226
  %v241 = vpack.c.b16 %v229, %v228
  %v242 = vpack.c.b16 %v231, %v230
  %v243 = vpack.c.b16 %v233, %v232
  %v244 = vpack.c.b16 %v235, %v234
  %v245 = vpack.c.b16 %v237, %v236
  %254 = vmatprep.subr.bf16.mxu0 0
  %255 = vmatpush1.bf16.msra.mxu0 %v238
  %256 = vmatprep.subr.bf16.mxu0 0
  %257 = vmatpush1.bf16.msra.mxu0 %v239
  %258 = vmatprep.subr.bf16.mxu0 0
  %259 = vmatpush1.bf16.msra.mxu0 %v240
  %260 = vmatprep.subr.bf16.mxu0 0
  %261 = vmatpush1.bf16.msra.mxu0 %v241
  %262 = vmatprep.subr.bf16.mxu0 0
  %263 = vmatpush1.bf16.msra.mxu0 %v242
  %264 = vmatprep.subr.bf16.mxu0 0
  %265 = vmatpush1.bf16.msra.mxu0 %v243
  %266 = vmatprep.subr.bf16.mxu0 0
  %267 = vmatpush1.bf16.msra.mxu0 %v244
  %268 = vmatprep.subr.bf16.mxu0 0
  %269 = vmatpush1.bf16.msra.mxu0 %v245
  %270 = vmatprep.subr.bf16.mxu0 0
  %271 = vmatpush1.bf16.msra.mxu0 0
  %272 = vmatprep.subr.bf16.mxu0 0
  %273 = vmatpush1.bf16.msra.mxu0 0
  %274 = vmatprep.subr.bf16.mxu0 0
  %275 = vmatpush1.bf16.msra.mxu0 0
  %276 = vmatprep.subr.bf16.mxu0 0
  %277 = vmatpush1.bf16.msra.mxu0 0
  %278 = vmatprep.subr.bf16.mxu0 0
  %279 = vmatpush1.bf16.msra.mxu0 0
  %280 = vmatprep.subr.bf16.mxu0 0
  %281 = vmatpush1.bf16.msra.mxu0 0
  %282 = vmatprep.subr.bf16.mxu0 0
  %283 = vmatpush1.bf16.msra.mxu0 0
  %284 = vmatprep.subr.bf16.mxu0 0
  %285 = vmatpush1.bf16.msra.mxu0 0
  %286 = vmatprep.mubr.bf16.mxu0 0
  %287 = vmatmul.mubr.bf16.gmra.mrb[0].mxu0 %v178
  %v288 = vpop.f32.mrb[0].mxu0
  %v289 = vadd.f32 %v204, %v288
  %v290 = vpop.f32.mrb[0].mxu0
  %v291 = vpop.f32.mrb[0].mxu0
  %v292 = vadd.f32 %v204, %v291
  %v293 = vpop.f32.mrb[0].mxu0
  %294 = vmatprep.mubr.bf16.mxu0 0
  %295 = vmatmul.mubr.bf16.gmra.mrb[0].mxu0 %v179
  %v296 = vpop.f32.mrb[0].mxu0
  %v297 = vadd.f32 %v204, %v296
  %v298 = vpop.f32.mrb[0].mxu0
  %v299 = vpop.f32.mrb[0].mxu0
  %v300 = vadd.f32 %v204, %v299
  %v301 = vpop.f32.mrb[0].mxu0
  %302 = vmatprep.mubr.bf16.mxu0 0
  %303 = vmatmul.mubr.bf16.gmra.mrb[0].mxu0 %v180
  %v304 = vpop.f32.mrb[0].mxu0
  %v305 = vadd.f32 %v204, %v304
  %v306 = vpop.f32.mrb[0].mxu0
  %v307 = vpop.f32.mrb[0].mxu0
  %v308 = vadd.f32 %v204, %v307
  %v309 = vpop.f32.mrb[0].mxu0
  %310 = vmatprep.mubr.bf16.mxu0 0
  %311 = vmatmul.mubr.bf16.gmra.mrb[0].mxu0 %v181
  %v312 = vpop.f32.mrb[0].mxu0
  %v313 = vadd.f32 %v204, %v312
  %v314 = vpop.f32.mrb[0].mxu0
  %v315 = vpop.f32.mrb[0].mxu0
  %v316 = vadd.f32 %v204, %v315
  %v317 = vpop.f32.mrb[0].mxu0
  %318 = vmatprep.mubr.bf16.mxu0 0
  %319 = vmatmul.mubr.bf16.gmra.mrb[0].mxu0 %v182
  %v320 = vpop.f32.mrb[0].mxu0
  %v321 = vadd.f32 %v204, %v320
  %v322 = vpop.f32.mrb[0].mxu0
  %v323 = vpop.f32.mrb[0].mxu0
  %v324 = vadd.f32 %v204, %v323
  %v325 = vpop.f32.mrb[0].mxu0
  %326 = vdwg.mxu0
  %v327 = vpack.c.bf16 %v292, %v289
  %v328 = vpack.c.bf16 %v300, %v297
  %v329 = vpack.c.bf16 %v308, %v305
  %v330 = vpack.c.bf16 %v316, %v313
  %v331 = vpack.c.bf16 %v324, %v321
  %v337 = vunpack.c.l.b16 %v327
  %v338 = vunpack.c.h.b16 %v327
  %v339 = vunpack.c.l.b16 %v328
  %v340 = vunpack.c.h.b16 %v328
  %v341 = vunpack.c.l.b16 %v329
  %v342 = vunpack.c.h.b16 %v329
  %v343 = vunpack.c.l.b16 %v330
  %v344 = vunpack.c.h.b16 %v330
  %v345 = vunpack.c.l.b16 %v331
  %v346 = vunpack.c.h.b16 %v331
  %v347 = vpack.c.b16 %v337, %v337
  %v348 = vpack.c.b16 %v338, %v338
  %v349 = vpack.c.b16 %v339, %v339
  %v350 = vpack.c.b16 %v340, %v340
  %v351 = vpack.c.b16 %v341, %v341
  %v352 = vpack.c.b16 %v342, %v342
  %v353 = vpack.c.b16 %v343, %v343
  %v354 = vpack.c.b16 %v344, %v344
  %v355 = vpack.c.b16 %v345, %v345
  %v356 = vpack.c.b16 %v346, %v346
  %367 = vst [vmem:[%s5] sm:$0xf] %v347
  %368 = vst [vmem:[%s5 + $0x4] sm:$0xf] %v348
  %369 = vst [vmem:[%s5 + $0x8] sm:$0xf] %v349
  %370 = vst [vmem:[%s5 + $0xc] sm:$0xf] %v350
  %371 = vst [vmem:[%s5 + $0x10] sm:$0xf] %v351
  %372 = vst [vmem:[%s5 + $0x14] sm:$0xf] %v352
  %373 = vst [vmem:[%s5 + $0x18] sm:$0xf] %v353
  %374 = vst [vmem:[%s5 + $0x1c] sm:$0xf] %v354
  %375 = vst [vmem:[%s5 + $0x20] sm:$0xf] %v355
  %376 = vst [vmem:[%s5 + $0x24] sm:$0xf] %v356
  // Predicated region
  $region22: #{_forward_impl.1} parent=0 // pred_check
    _
  $region23: #{_forward_impl.1} parent=0 // pred_check_branch
    %378 = sbr.rel (0) target = $region25
  $region24: #{_forward_impl.1} parent=0 // pred_region
    _
  $region25: #{_forward_impl.1} parent=0 // pred_fallthru
    _
  // Predicated region
  $region26: #{_forward_impl.1} parent=0 // pred_check
    _
  $region27: #{_forward_impl.1} parent=0 // pred_check_branch
    %380 = sbr.rel (0) target = $region29
  $region28: #{_forward_impl.1} parent=0 // pred_region
    _
  $region29: #{_forward_impl.1} parent=0 // pred_fallthru
    _

</llo_original>
